<compile_context>
chip_gen: v5e
topology: v5e:2x2
jax: 0.10.0
libtpu: 0.0.40
codegen_flags: <defaults>
</compile_context>

<pallas_src>
import jax
import jax.numpy as jnp
from jax.experimental import pallas as pl
from jax.experimental.pallas import tpu as pltpu  # noqa: F401  (kept for TPU-specific tweaks)


def _rnn_kernel(x_ref, wih_ref, whh_ref, b_ref, hn_ref):
    """Single invocation: full tanh-RNN recurrence over the (T, B, F) block.

    h_t = tanh(x_t @ W_ih + h_{t-1} @ W_hh + (b_ih + b_hh)),   h_0 = 0
    Writes h_T (shape (B, H)) to hn_ref.
    """
    T, B, F = x_ref.shape
    H = whh_ref.shape[1]

    # Hoisted input projection: one (T*B, F) @ (F, H) matmul instead of T tiny ones.
    x_flat = x_ref[...].reshape(T * B, F)
    ih = (
        jnp.dot(x_flat, wih_ref[...], preferred_element_type=jnp.float32)
        + b_ref[...]
    ).reshape(T, B, H)

    whh = whh_ref[...]

    # Fully-unrolled recurrence (static trip count) with vreg-resident hidden state;
    # only (B,H)@(H,H) + tanh remain on the serial critical path.
    h = jnp.zeros((B, H), jnp.float32)
    for t in range(T):
        h = jnp.tanh(ih[t] + jnp.dot(h, whh, preferred_element_type=jnp.float32))

    hn_ref[...] = h


@jax.jit
def my_rnn_forward(x_idx, embedding, w_ih, w_hh, b_ih, b_hh, w_fc, b_fc):
    """Forward pass matching MY_RNN.forward in eval mode (dropout == identity).

    x_idx:     (B, T) int32 token ids
    embedding: (V, F) float32
    w_ih:      (H, F)   (PyTorch nn.RNN weight_ih_l0)
    w_hh:      (H, H)   (PyTorch nn.RNN weight_hh_l0)
    b_ih,b_hh: (H,)
    w_fc:      (C, H)   (PyTorch nn.Linear weight)
    b_fc:      (C,)
    returns:   (B, C)   == fc(h_n).squeeze(0) for layer == 1
    """
    B, T = x_idx.shape
    V, F = embedding.shape
    H = w_hh.shape[0]
    C = w_fc.shape[0]

    # --- glue (XLA): embedding gather + time-major layout ---
    emb = jnp.take(embedding, x_idx, axis=0)                      # (B, T, F)
    # nn.Dropout in eval mode is the identity.
    # TODO(synk): training-mode dropout (random mask * 1/(1-p)) not implemented.
    x_tbf = jnp.transpose(emb, (1, 0, 2)).astype(jnp.float32)     # (T, B, F)

    # Pre-transpose RNN weights so the kernel does row-major (rows, K) @ (K, N) matmuls.
    wih_t = jnp.transpose(w_ih).astype(jnp.float32)               # (F, H)
    whh_t = jnp.transpose(w_hh).astype(jnp.float32)               # (H, H)
    b_sum = (b_ih + b_hh).reshape(1, H).astype(jnp.float32)       # (1, H)

    # Single-invocation kernel: no grid, whole arrays resident in VMEM (default BlockSpecs).
    h_n = pl.pallas_call(
        _rnn_kernel,
        out_shape=jax.ShapeDtypeStruct((B, H), jnp.float32),
    )(x_tbf, wih_t, whh_t, b_sum)

    # Final projection (H=128 -> C=5) in XLA: kernel output stays lane-dense (B, 128).
    return h_n @ jnp.transpose(w_fc).astype(jnp.float32) + b_fc.astype(jnp.float32)


def _reference_forward(x_idx, embedding, w_ih, w_hh, b_ih, b_hh, w_fc, b_fc):
    """Pure-JAX reference of the same forward pass (for sanity checking)."""
    emb = jnp.take(embedding, x_idx, axis=0)        # (B, T, F)
    B, T, _ = emb.shape
    H = w_hh.shape[0]
    h = jnp.zeros((B, H), jnp.float32)
    for t in range(T):
        h = jnp.tanh(emb[:, t, :] @ w_ih.T + b_ih + h @ w_hh.T + b_hh)
    return h @ w_fc.T + b_fc


if __name__ == "__main__":
    # Small, TPU-friendly shapes consistent with the module's __init__:
    #   len_words=100, len_feature=128, len_hidden=128, typenum=5, layer=1
    V, F, H, C = 100, 128, 128, 5
    B, T = 8, 8

    key = jax.random.PRNGKey(0)
    k_emb, k_wih, k_whh, k_bih, k_bhh, k_wfc, k_bfc, k_x = jax.random.split(key, 8)

    # deterministic parameter init (xavier-normal-ish embedding, uniform RNN/Linear)
    emb_std = (2.0 / (V + F)) ** 0.5
    embedding = emb_std * jax.random.normal(k_emb, (V, F), jnp.float32)
    rnn_bound = 1.0 / (H ** 0.5)
    w_ih = jax.random.uniform(k_wih, (H, F), jnp.float32, -rnn_bound, rnn_bound)
    w_hh = jax.random.uniform(k_whh, (H, H), jnp.float32, -rnn_bound, rnn_bound)
    b_ih = jax.random.uniform(k_bih, (H,), jnp.float32, -rnn_bound, rnn_bound)
    b_hh = jax.random.uniform(k_bhh, (H,), jnp.float32, -rnn_bound, rnn_bound)
    w_fc = jax.random.uniform(k_wfc, (C, H), jnp.float32, -rnn_bound, rnn_bound)
    b_fc = jax.random.uniform(k_bfc, (C,), jnp.float32, -rnn_bound, rnn_bound)

    x_idx = jax.random.randint(k_x, (B, T), 0, V, jnp.int32)

    out = my_rnn_forward(x_idx, embedding, w_ih, w_hh, b_ih, b_hh, w_fc, b_fc)
    out = jax.block_until_ready(out)

    ref = _reference_forward(x_idx, embedding, w_ih, w_hh, b_ih, b_hh, w_fc, b_fc)
    assert out.shape == (B, C)
    assert jnp.allclose(out, ref, atol=1e-4, rtol=1e-4), "mismatch vs reference"

    print("KERNEL_OK")
</pallas_src>

<mosaic_0001>
module attributes {stable_mosaic.version = 11 : i64} {
  func.func @_rnn_kernel(%arg0: memref<8x8x128xf32, #tpu.memory_space<vmem>>, %arg1: memref<128x128xf32, #tpu.memory_space<vmem>>, %arg2: memref<128x128xf32, #tpu.memory_space<vmem>>, %arg3: memref<1x128xf32, #tpu.memory_space<vmem>>, %arg4: memref<8x128xf32, #tpu.memory_space<vmem>>) attributes {dimension_semantics = [], scalar_prefetch = 0 : i64, scratch_operands = 0 : i64, tpu.core_type = #tpu.core_type<tc>} {
    %c0 = arith.constant 0 : index
    %c0_0 = arith.constant 0 : index
    %c0_1 = arith.constant 0 : index
    %0 = vector.load %arg0[%c0, %c0_0, %c0_1] : memref<8x8x128xf32, #tpu.memory_space<vmem>>, vector<8x8x128xf32>
    %1 = vector.shape_cast %0 : vector<8x8x128xf32> to vector<64x128xf32>
    %c0_2 = arith.constant 0 : index
    %c0_3 = arith.constant 0 : index
    %2 = vector.load %arg1[%c0_2, %c0_3] : memref<128x128xf32, #tpu.memory_space<vmem>>, vector<128x128xf32>
    %cst = arith.constant dense<0.000000e+00> : vector<64x128xf32>
    %3 = tpu.matmul %1, %2, %cst {dimension_numbers = #tpu.dot_dimension_numbers<[1], [0], [0], [1], [0, 0, 1, 1], [], []>} : vector<64x128xf32>, vector<128x128xf32>, vector<64x128xf32> -> vector<64x128xf32>
    %c0_4 = arith.constant 0 : index
    %c0_5 = arith.constant 0 : index
    %4 = vector.load %arg3[%c0_4, %c0_5] : memref<1x128xf32, #tpu.memory_space<vmem>>, vector<1x128xf32>
    %5 = vector.broadcast %4 : vector<1x128xf32> to vector<64x128xf32>
    %6 = arith.addf %3, %5 : vector<64x128xf32>
    %7 = vector.shape_cast %6 : vector<64x128xf32> to vector<8x8x128xf32>
    %c0_6 = arith.constant 0 : index
    %c0_7 = arith.constant 0 : index
    %8 = vector.load %arg2[%c0_6, %c0_7] : memref<128x128xf32, #tpu.memory_space<vmem>>, vector<128x128xf32>
    %cst_8 = arith.constant 0.000000e+00 : f32
    %9 = vector.broadcast %cst_8 : f32 to vector<8x128xf32>
    %10 = vector.extract_strided_slice %7 {offsets = [0, 0, 0], sizes = [1, 8, 128], strides = [1, 1, 1]} : vector<8x8x128xf32> to vector<1x8x128xf32>
    %11 = vector.shape_cast %10 : vector<1x8x128xf32> to vector<8x128xf32>
    %cst_9 = arith.constant dense<0.000000e+00> : vector<8x128xf32>
    %12 = tpu.matmul %9, %8, %cst_9 {dimension_numbers = #tpu.dot_dimension_numbers<[1], [0], [0], [1], [0, 0, 1, 1], [], []>} : vector<8x128xf32>, vector<128x128xf32>, vector<8x128xf32> -> vector<8x128xf32>
    %13 = arith.addf %11, %12 : vector<8x128xf32>
    %14 = math.tanh %13 : vector<8x128xf32>
    %15 = vector.extract_strided_slice %7 {offsets = [1, 0, 0], sizes = [1, 8, 128], strides = [1, 1, 1]} : vector<8x8x128xf32> to vector<1x8x128xf32>
    %16 = vector.shape_cast %15 : vector<1x8x128xf32> to vector<8x128xf32>
    %cst_10 = arith.constant dense<0.000000e+00> : vector<8x128xf32>
    %17 = tpu.matmul %14, %8, %cst_10 {dimension_numbers = #tpu.dot_dimension_numbers<[1], [0], [0], [1], [0, 0, 1, 1], [], []>} : vector<8x128xf32>, vector<128x128xf32>, vector<8x128xf32> -> vector<8x128xf32>
    %18 = arith.addf %16, %17 : vector<8x128xf32>
    %19 = math.tanh %18 : vector<8x128xf32>
    %20 = vector.extract_strided_slice %7 {offsets = [2, 0, 0], sizes = [1, 8, 128], strides = [1, 1, 1]} : vector<8x8x128xf32> to vector<1x8x128xf32>
    %21 = vector.shape_cast %20 : vector<1x8x128xf32> to vector<8x128xf32>
    %cst_11 = arith.constant dense<0.000000e+00> : vector<8x128xf32>
    %22 = tpu.matmul %19, %8, %cst_11 {dimension_numbers = #tpu.dot_dimension_numbers<[1], [0], [0], [1], [0, 0, 1, 1], [], []>} : vector<8x128xf32>, vector<128x128xf32>, vector<8x128xf32> -> vector<8x128xf32>
    %23 = arith.addf %21, %22 : vector<8x128xf32>
    %24 = math.tanh %23 : vector<8x128xf32>
    %25 = vector.extract_strided_slice %7 {offsets = [3, 0, 0], sizes = [1, 8, 128], strides = [1, 1, 1]} : vector<8x8x128xf32> to vector<1x8x128xf32>
    %26 = vector.shape_cast %25 : vector<1x8x128xf32> to vector<8x128xf32>
    %cst_12 = arith.constant dense<0.000000e+00> : vector<8x128xf32>
    %27 = tpu.matmul %24, %8, %cst_12 {dimension_numbers = #tpu.dot_dimension_numbers<[1], [0], [0], [1], [0, 0, 1, 1], [], []>} : vector<8x128xf32>, vector<128x128xf32>, vector<8x128xf32> -> vector<8x128xf32>
    %28 = arith.addf %26, %27 : vector<8x128xf32>
    %29 = math.tanh %28 : vector<8x128xf32>
    %30 = vector.extract_strided_slice %7 {offsets = [4, 0, 0], sizes = [1, 8, 128], strides = [1, 1, 1]} : vector<8x8x128xf32> to vector<1x8x128xf32>
    %31 = vector.shape_cast %30 : vector<1x8x128xf32> to vector<8x128xf32>
    %cst_13 = arith.constant dense<0.000000e+00> : vector<8x128xf32>
    %32 = tpu.matmul %29, %8, %cst_13 {dimension_numbers = #tpu.dot_dimension_numbers<[1], [0], [0], [1], [0, 0, 1, 1], [], []>} : vector<8x128xf32>, vector<128x128xf32>, vector<8x128xf32> -> vector<8x128xf32>
    %33 = arith.addf %31, %32 : vector<8x128xf32>
    %34 = math.tanh %33 : vector<8x128xf32>
    %35 = vector.extract_strided_slice %7 {offsets = [5, 0, 0], sizes = [1, 8, 128], strides = [1, 1, 1]} : vector<8x8x128xf32> to vector<1x8x128xf32>
    %36 = vector.shape_cast %35 : vector<1x8x128xf32> to vector<8x128xf32>
    %cst_14 = arith.constant dense<0.000000e+00> : vector<8x128xf32>
    %37 = tpu.matmul %34, %8, %cst_14 {dimension_numbers = #tpu.dot_dimension_numbers<[1], [0], [0], [1], [0, 0, 1, 1], [], []>} : vector<8x128xf32>, vector<128x128xf32>, vector<8x128xf32> -> vector<8x128xf32>
    %38 = arith.addf %36, %37 : vector<8x128xf32>
    %39 = math.tanh %38 : vector<8x128xf32>
    %40 = vector.extract_strided_slice %7 {offsets = [6, 0, 0], sizes = [1, 8, 128], strides = [1, 1, 1]} : vector<8x8x128xf32> to vector<1x8x128xf32>
    %41 = vector.shape_cast %40 : vector<1x8x128xf32> to vector<8x128xf32>
    %cst_15 = arith.constant dense<0.000000e+00> : vector<8x128xf32>
    %42 = tpu.matmul %39, %8, %cst_15 {dimension_numbers = #tpu.dot_dimension_numbers<[1], [0], [0], [1], [0, 0, 1, 1], [], []>} : vector<8x128xf32>, vector<128x128xf32>, vector<8x128xf32> -> vector<8x128xf32>
    %43 = arith.addf %41, %42 : vector<8x128xf32>
    %44 = math.tanh %43 : vector<8x128xf32>
    %45 = vector.extract_strided_slice %7 {offsets = [7, 0, 0], sizes = [1, 8, 128], strides = [1, 1, 1]} : vector<8x8x128xf32> to vector<1x8x128xf32>
    %46 = vector.shape_cast %45 : vector<1x8x128xf32> to vector<8x128xf32>
    %cst_16 = arith.constant dense<0.000000e+00> : vector<8x128xf32>
    %47 = tpu.matmul %44, %8, %cst_16 {dimension_numbers = #tpu.dot_dimension_numbers<[1], [0], [0], [1], [0, 0, 1, 1], [], []>} : vector<8x128xf32>, vector<128x128xf32>, vector<8x128xf32> -> vector<8x128xf32>
    %48 = arith.addf %46, %47 : vector<8x128xf32>
    %49 = math.tanh %48 : vector<8x128xf32>
    %c0_17 = arith.constant 0 : index
    %c0_18 = arith.constant 0 : index
    %50 = vector.load %arg4[%c0_17, %c0_18] : memref<8x128xf32, #tpu.memory_space<vmem>>, vector<8x128xf32>
    tpu.vector_store %arg4[%c0_17, %c0_18], %49 {strides = array<i32>} : memref<8x128xf32, #tpu.memory_space<vmem>>, vector<8x128xf32>,
    return
  }
}

</mosaic_0001>

<llo_original>
// kernel: my_rnn_forward.1
$region0: #{my_rnn_forward.1}
  #allocation0 [shape = 'u32[]', space=smem, size = 0x4, offset = 0x4, fixed_abs, tag = 'smem constant byte address 0x4 - core index']
  #allocation1 [shape = 'u32[72,128]{1,0:T(1,128)}', space=vmem, size = 0x9000, scoped, tag = 'internal scratch']
  %s0 = inlined_call_operand.vmem [shape: f32[8,8,128], index: 0, kind: input, shape index: {}]
  %s1 = inlined_call_operand.vmem [shape: f32[128,128], index: 1, kind: input, shape index: {}]
  %s2 = inlined_call_operand.vmem [shape: f32[128,128], index: 2, kind: input, shape index: {}]
  %s3 = inlined_call_operand.vmem [shape: f32[1,128], index: 3, kind: input, shape index: {}]
  %s4 = inlined_call_operand.vmem [shape: f32[8,128], index: 4, kind: output, shape index: {}]
  %s5 = sld [smem:[#allocation0]]
  $region26: #{my_rnn_forward.1} parent=0
    _
  %s7 = ssub.s32 1, %s5
  %s8 = scalar_select 0, %s7, %s5
  // Predicated region
  $region2: #{my_rnn_forward.1} parent=0 // pred_check
    _
  $region3: #{my_rnn_forward.1} parent=0 // pred_check_branch
    %10 = sbr.rel (0) target = $region5
  $region4: #{my_rnn_forward.1} parent=0 // pred_region
    _
  $region5: #{my_rnn_forward.1} parent=0 // pred_fallthru
    _
  // Predicated region
  $region6: #{my_rnn_forward.1} parent=0 // pred_check
    _
  $region7: #{my_rnn_forward.1} parent=0 // pred_check_branch
    %12 = sbr.rel (0) target = $region9
  $region8: #{my_rnn_forward.1} parent=0 // pred_region
    _
  $region9: #{my_rnn_forward.1} parent=0 // pred_fallthru
    _
  // Predicated region
  $region10: #{my_rnn_forward.1} parent=0 // pred_check
    _
  $region11: #{my_rnn_forward.1} parent=0 // pred_check_branch
    %14 = sbr.rel (0) target = $region13
  $region12: #{my_rnn_forward.1} parent=0 // pred_region
    _
  $region13: #{my_rnn_forward.1} parent=0 // pred_fallthru
    _
  // Predicated region
  $region14: #{my_rnn_forward.1} parent=0 // pred_check
    _
  $region15: #{my_rnn_forward.1} parent=0 // pred_check_branch
    %16 = sbr.rel (0) target = $region17
  $region16: #{my_rnn_forward.1} parent=0 // pred_region
    _
  $region17: #{my_rnn_forward.1} parent=0 // pred_fallthru
    _
  %v17 = vld [vmem:[%s0] sm:$0xff]
  %v18 = vld [vmem:[%s0 + $0x8] sm:$0xff]
  %v19 = vld [vmem:[%s0 + $0x10] sm:$0xff]
  %v20 = vld [vmem:[%s0 + $0x18] sm:$0xff]
  %v21 = vld [vmem:[%s0 + $0x20] sm:$0xff]
  %v22 = vld [vmem:[%s0 + $0x28] sm:$0xff]
  %v23 = vld [vmem:[%s0 + $0x30] sm:$0xff]
  %v24 = vld [vmem:[%s0 + $0x38] sm:$0xff]
  %v25 = vld [vmem:[%s1] sm:$0xff]
  %v26 = vld [vmem:[%s1 + $0x8] sm:$0xff]
  %v27 = vld [vmem:[%s1 + $0x10] sm:$0xff]
  %v28 = vld [vmem:[%s1 + $0x18] sm:$0xff]
  %v29 = vld [vmem:[%s1 + $0x20] sm:$0xff]
  %v30 = vld [vmem:[%s1 + $0x28] sm:$0xff]
  %v31 = vld [vmem:[%s1 + $0x30] sm:$0xff]
  %v32 = vld [vmem:[%s1 + $0x38] sm:$0xff]
  %v33 = vld [vmem:[%s1 + $0x40] sm:$0xff]
  %v34 = vld [vmem:[%s1 + $0x48] sm:$0xff]
  %v35 = vld [vmem:[%s1 + $0x50] sm:$0xff]
  %v36 = vld [vmem:[%s1 + $0x58] sm:$0xff]
  %v37 = vld [vmem:[%s1 + $0x60] sm:$0xff]
  %v38 = vld [vmem:[%s1 + $0x68] sm:$0xff]
  %v39 = vld [vmem:[%s1 + $0x70] sm:$0xff]
  %v40 = vld [vmem:[%s1 + $0x78] sm:$0xff]
  %v41 = vld [vmem:[%s3] sm:$0x1]
  %v43 = vperm.slane %v41, 0
  %45 = vmatpush.msra.mxu0 %v40
  %46 = vmatpush.msra.mxu0 %v39
  %47 = vmatpush.msra.mxu0 %v38
  %48 = vmatpush.msra.mxu0 %v37
  %49 = vmatpush.msra.mxu0 %v36
  %50 = vmatpush.msra.mxu0 %v35
  %51 = vmatpush.msra.mxu0 %v34
  %52 = vmatpush.msra.mxu0 %v33
  %53 = vmatpush.msra.mxu0 %v32
  %54 = vmatpush.msra.mxu0 %v31
  %55 = vmatpush.msra.mxu0 %v30
  %56 = vmatpush.msra.mxu0 %v29
  %57 = vmatpush.msra.mxu0 %v28
  %58 = vmatpush.msra.mxu0 %v27
  %59 = vmatpush.msra.mxu0 %v26
  %60 = vmatpush.msra.mxu0 %v25
  %61 = vmatmul.f32.gmra.mxu0 %v17
  %v62 = vpop.f32.mrf.mxu0
  %v63 = vadd.f32 %v43, %v62
  %64 = vmatmul.f32.gmra.mxu0 %v18
  %v65 = vpop.f32.mrf.mxu0
  %v66 = vadd.f32 %v43, %v65
  %67 = vmatmul.f32.gmra.mxu0 %v19
  %v68 = vpop.f32.mrf.mxu0
  %v69 = vadd.f32 %v43, %v68
  %70 = vmatmul.f32.gmra.mxu0 %v20
  %v71 = vpop.f32.mrf.mxu0
  %v72 = vadd.f32 %v43, %v71
  %73 = vmatmul.f32.gmra.mxu0 %v21
  %v74 = vpop.f32.mrf.mxu0
  %v75 = vadd.f32 %v43, %v74
  %76 = vmatmul.f32.gmra.mxu0 %v22
  %v77 = vpop.f32.mrf.mxu0
  %v78 = vadd.f32 %v43, %v77
  %79 = vmatmul.f32.gmra.mxu0 %v23
  %v80 = vpop.f32.mrf.mxu0
  %v81 = vadd.f32 %v43, %v80
  %82 = vmatmul.f32.gmra.mxu0 %v24
  %v83 = vpop.f32.mrf.mxu0
  %v84 = vadd.f32 %v43, %v83
  %85 = vdwg.mxu0
  %v86 = vld [vmem:[%s2] sm:$0xff]
  %v87 = vld [vmem:[%s2 + $0x8] sm:$0xff]
  %v88 = vld [vmem:[%s2 + $0x10] sm:$0xff]
  %v89 = vld [vmem:[%s2 + $0x18] sm:$0xff]
  %v90 = vld [vmem:[%s2 + $0x20] sm:$0xff]
  %v91 = vld [vmem:[%s2 + $0x28] sm:$0xff]
  %v92 = vld [vmem:[%s2 + $0x30] sm:$0xff]
  %v93 = vld [vmem:[%s2 + $0x38] sm:$0xff]
  %v94 = vld [vmem:[%s2 + $0x40] sm:$0xff]
  %v95 = vld [vmem:[%s2 + $0x48] sm:$0xff]
  %v96 = vld [vmem:[%s2 + $0x50] sm:$0xff]
  %v97 = vld [vmem:[%s2 + $0x58] sm:$0xff]
  %v98 = vld [vmem:[%s2 + $0x60] sm:$0xff]
  %v99 = vld [vmem:[%s2 + $0x68] sm:$0xff]
  %v100 = vld [vmem:[%s2 + $0x70] sm:$0xff]
  %v101 = vld [vmem:[%s2 + $0x78] sm:$0xff]
  %102 = vmatpush.msra.mxu0 %v101
  %103 = vmatpush.msra.mxu0 %v100
  %104 = vmatpush.msra.mxu0 %v99
  %105 = vmatpush.msra.mxu0 %v98
  %106 = vmatpush.msra.mxu0 %v97
  %107 = vmatpush.msra.mxu0 %v96
  %108 = vmatpush.msra.mxu0 %v95
  %109 = vmatpush.msra.mxu0 %v94
  %110 = vmatpush.msra.mxu0 %v93
  %111 = vmatpush.msra.mxu0 %v92
  %112 = vmatpush.msra.mxu0 %v91
  %113 = vmatpush.msra.mxu0 %v90
  %114 = vmatpush.msra.mxu0 %v89
  %115 = vmatpush.msra.mxu0 %v88
  %116 = vmatpush.msra.mxu0 %v87
  %117 = vmatpush.msra.mxu0 %v86
  %118 = vmatmul.f32.gmra.mxu0 0.0
  %v119 = vpop.f32.mrf.mxu0
  %v120 = vadd.f32 0.0, %v119
  %121 = vdwg.mxu0
  %v122 = vadd.f32 %v63, %v120
  %v123 = vtanh.pop %v122
  %124 = vmatpush.msra.mxu0 %v101
  %125 = vmatpush.msra.mxu0 %v100
  %126 = vmatpush.msra.mxu0 %v99
  %127 = vmatpush.msra.mxu0 %v98
  %128 = vmatpush.msra.mxu0 %v97
  %129 = vmatpush.msra.mxu0 %v96
  %130 = vmatpush.msra.mxu0 %v95
  %131 = vmatpush.msra.mxu0 %v94
  %132 = vmatpush.msra.mxu0 %v93
  %133 = vmatpush.msra.mxu0 %v92
  %134 = vmatpush.msra.mxu0 %v91
  %135 = vmatpush.msra.mxu0 %v90
  %136 = vmatpush.msra.mxu0 %v89
  %137 = vmatpush.msra.mxu0 %v88
  %138 = vmatpush.msra.mxu0 %v87
  %139 = vmatpush.msra.mxu0 %v86
  %140 = vmatmul.f32.gmra.mxu0 %v123
  %v141 = vpop.f32.mrf.mxu0
  %v142 = vadd.f32 0.0, %v141
  %143 = vdwg.mxu0
  %v144 = vadd.f32 %v66, %v142
  %v145 = vtanh.pop %v144
  %146 = vmatpush.msra.mxu0 %v101
  %147 = vmatpush.msra.mxu0 %v100
  %148 = vmatpush.msra.mxu0 %v99
  %149 = vmatpush.msra.mxu0 %v98
  %150 = vmatpush.msra.mxu0 %v97
  %151 = vmatpush.msra.mxu0 %v96
  %152 = vmatpush.msra.mxu0 %v95
  %153 = vmatpush.msra.mxu0 %v94
  %154 = vmatpush.msra.mxu0 %v93
  %155 = vmatpush.msra.mxu0 %v92
  %156 = vmatpush.msra.mxu0 %v91
  %157 = vmatpush.msra.mxu0 %v90
  %158 = vmatpush.msra.mxu0 %v89
  %159 = vmatpush.msra.mxu0 %v88
  %160 = vmatpush.msra.mxu0 %v87
  %161 = vmatpush.msra.mxu0 %v86
  %162 = vmatmul.f32.gmra.mxu0 %v145
  %v163 = vpop.f32.mrf.mxu0
  %v164 = vadd.f32 0.0, %v163
  %165 = vdwg.mxu0
  %v166 = vadd.f32 %v69, %v164
  %v167 = vtanh.pop %v166
  %168 = vmatpush.msra.mxu0 %v101
  %169 = vmatpush.msra.mxu0 %v100
  %170 = vmatpush.msra.mxu0 %v99
  %171 = vmatpush.msra.mxu0 %v98
  %172 = vmatpush.msra.mxu0 %v97
  %173 = vmatpush.msra.mxu0 %v96
  %174 = vmatpush.msra.mxu0 %v95
  %175 = vmatpush.msra.mxu0 %v94
  %176 = vmatpush.msra.mxu0 %v93
  %177 = vmatpush.msra.mxu0 %v92
  %178 = vmatpush.msra.mxu0 %v91
  %179 = vmatpush.msra.mxu0 %v90
  %180 = vmatpush.msra.mxu0 %v89
  %181 = vmatpush.msra.mxu0 %v88
  %182 = vmatpush.msra.mxu0 %v87
  %183 = vmatpush.msra.mxu0 %v86
  %184 = vmatmul.f32.gmra.mxu0 %v167
  %v185 = vpop.f32.mrf.mxu0
  %v186 = vadd.f32 0.0, %v185
  %187 = vdwg.mxu0
  %v188 = vadd.f32 %v72, %v186
  %v189 = vtanh.pop %v188
  %190 = vmatpush.msra.mxu0 %v101
  %191 = vmatpush.msra.mxu0 %v100
  %192 = vmatpush.msra.mxu0 %v99
  %193 = vmatpush.msra.mxu0 %v98
  %194 = vmatpush.msra.mxu0 %v97
  %195 = vmatpush.msra.mxu0 %v96
  %196 = vmatpush.msra.mxu0 %v95
  %197 = vmatpush.msra.mxu0 %v94
  %198 = vmatpush.msra.mxu0 %v93
  %199 = vmatpush.msra.mxu0 %v92
  %200 = vmatpush.msra.mxu0 %v91
  %201 = vmatpush.msra.mxu0 %v90
  %202 = vmatpush.msra.mxu0 %v89
  %203 = vmatpush.msra.mxu0 %v88
  %204 = vmatpush.msra.mxu0 %v87
  %205 = vmatpush.msra.mxu0 %v86
  %206 = vmatmul.f32.gmra.mxu0 %v189
  %v207 = vpop.f32.mrf.mxu0
  %v208 = vadd.f32 0.0, %v207
  %209 = vdwg.mxu0
  %v210 = vadd.f32 %v75, %v208
  %v211 = vtanh.pop %v210
  %212 = vmatpush.msra.mxu0 %v101
  %213 = vmatpush.msra.mxu0 %v100
  %214 = vmatpush.msra.mxu0 %v99
  %215 = vmatpush.msra.mxu0 %v98
  %216 = vmatpush.msra.mxu0 %v97
  %217 = vmatpush.msra.mxu0 %v96
  %218 = vmatpush.msra.mxu0 %v95
  %219 = vmatpush.msra.mxu0 %v94
  %220 = vmatpush.msra.mxu0 %v93
  %221 = vmatpush.msra.mxu0 %v92
  %222 = vmatpush.msra.mxu0 %v91
  %223 = vmatpush.msra.mxu0 %v90
  %224 = vmatpush.msra.mxu0 %v89
  %225 = vmatpush.msra.mxu0 %v88
  %226 = vmatpush.msra.mxu0 %v87
  %227 = vmatpush.msra.mxu0 %v86
  %228 = vmatmul.f32.gmra.mxu0 %v211
  %v229 = vpop.f32.mrf.mxu0
  %v230 = vadd.f32 0.0, %v229
  %231 = vdwg.mxu0
  %v232 = vadd.f32 %v78, %v230
  %v233 = vtanh.pop %v232
  %234 = vmatpush.msra.mxu0 %v101
  %235 = vmatpush.msra.mxu0 %v100
  %236 = vmatpush.msra.mxu0 %v99
  %237 = vmatpush.msra.mxu0 %v98
  %238 = vmatpush.msra.mxu0 %v97
  %239 = vmatpush.msra.mxu0 %v96
  %240 = vmatpush.msra.mxu0 %v95
  %241 = vmatpush.msra.mxu0 %v94
  %242 = vmatpush.msra.mxu0 %v93
  %243 = vmatpush.msra.mxu0 %v92
  %244 = vmatpush.msra.mxu0 %v91
  %245 = vmatpush.msra.mxu0 %v90
  %246 = vmatpush.msra.mxu0 %v89
  %247 = vmatpush.msra.mxu0 %v88
  %248 = vmatpush.msra.mxu0 %v87
  %249 = vmatpush.msra.mxu0 %v86
  %250 = vmatmul.f32.gmra.mxu0 %v233
  %v251 = vpop.f32.mrf.mxu0
  %v252 = vadd.f32 0.0, %v251
  %253 = vdwg.mxu0
  %v254 = vadd.f32 %v81, %v252
  %v255 = vtanh.pop %v254
  %256 = vmatpush.msra.mxu0 %v101
  %257 = vmatpush.msra.mxu0 %v100
  %258 = vmatpush.msra.mxu0 %v99
  %259 = vmatpush.msra.mxu0 %v98
  %260 = vmatpush.msra.mxu0 %v97
  %261 = vmatpush.msra.mxu0 %v96
  %262 = vmatpush.msra.mxu0 %v95
  %263 = vmatpush.msra.mxu0 %v94
  %264 = vmatpush.msra.mxu0 %v93
  %265 = vmatpush.msra.mxu0 %v92
  %266 = vmatpush.msra.mxu0 %v91
  %267 = vmatpush.msra.mxu0 %v90
  %268 = vmatpush.msra.mxu0 %v89
  %269 = vmatpush.msra.mxu0 %v88
  %270 = vmatpush.msra.mxu0 %v87
  %271 = vmatpush.msra.mxu0 %v86
  %272 = vmatmul.f32.gmra.mxu0 %v255
  %v273 = vpop.f32.mrf.mxu0
  %v274 = vadd.f32 0.0, %v273
  %275 = vdwg.mxu0
  %v276 = vadd.f32 %v84, %v274
  %v277 = vtanh.pop %v276
  %278 = vst [vmem:[%s4] sm:$0xff] %v277
  // Predicated region
  $region18: #{my_rnn_forward.1} parent=0 // pred_check
    _
  $region19: #{my_rnn_forward.1} parent=0 // pred_check_branch
    %280 = sbr.rel (0) target = $region21
  $region20: #{my_rnn_forward.1} parent=0 // pred_region
    _
  $region21: #{my_rnn_forward.1} parent=0 // pred_fallthru
    _
  // Predicated region
  $region22: #{my_rnn_forward.1} parent=0 // pred_check
    _
  $region23: #{my_rnn_forward.1} parent=0 // pred_check_branch
    %282 = sbr.rel (0) target = $region25
  $region24: #{my_rnn_forward.1} parent=0 // pred_region
    _
  $region25: #{my_rnn_forward.1} parent=0 // pred_fallthru
    _

</llo_original>
